<compile_context>
chip_gen: v6e
topology: v6e:2x2x1
jax: 0.10.0
libtpu: 0.0.40
codegen_flags: <defaults>
</compile_context>

<pallas_src>
import numpy as np
import jax
import jax.numpy as jnp
from jax.experimental import pallas as pl
from jax.experimental.pallas import tpu as pltpu


def _cdiv(a, b):
    return -(-a // b)


def _round_up(a, b):
    return _cdiv(a, b) * b


# ----------------------------- Pallas kernel -------------------------------

def _branch_kernel(x_ref, seg_ref, w_ref, b_ref, wout_ref, acc_ref):
    """One row tile of one branch (diagonal or off-diagonal).

    x_ref    : (TILE_R, num_in)       streamed rows, f32 or bf16
    seg_ref  : (1, 1, TILE_R) int32   molecule id per row, -1 for invalid rows
    w_ref    : (num_out, num_in)      W^T, resident, compute dtype
    b_ref    : (num_out, 1) f32       bias column, resident
    wout_ref : (num_out, 1) f32       this branch's half of linear_out.weight
    acc_ref  : (1, num_mol_pad, 1) f32  resident output block (one per slab)
    """
    @pl.when(pl.program_id(1) == 0)
    def _():
        acc_ref[...] = jnp.zeros_like(acc_ref)

    x = x_ref[...]
    if x.dtype != w_ref.dtype:
        x = x.astype(w_ref.dtype)

    # Lane-dense activations: (num_out, TILE_R) via an NT MXU matmul
    # (same dimension numbers as q @ k^T in the flash-attention kernel).
    h = jax.lax.dot_general(w_ref[...], x, (((1,), (1,)), ((), ())),
                            preferred_element_type=jnp.float32)
    h = h + b_ref[...]
    h = h * jax.nn.sigmoid(h)                        # SiLU on dense vregs

    # Fold linear_out's weight as a per-sublane scale, reduce the num_out
    # sublanes -> one scalar per row, lane-dense (1, TILE_R).
    s = jnp.sum(h * wout_ref[...], axis=0, keepdims=True)

    # Segment scatter-add.  A select (never a multiply) keyed on the segment
    # id guarantees ragged-tail / OOB garbage rows (seg == -1) contribute
    # exact zeros even if the streamed tile held NaN/Inf there.
    seg = seg_ref[0]                                             # (1, TILE_R)
    mol = jax.lax.broadcasted_iota(jnp.int32, (acc_ref.shape[1], 1), 0)
    masked = jnp.where(seg == mol, s, 0.0)           # (num_mol_pad, TILE_R)
    acc_ref[...] += jnp.sum(masked, axis=1, keepdims=True)[None]


# --------------------------- per-branch wrapper -----------------------------

def _energy_branch(x, sizes, w, b, wout_row, *, num_mol_pad, tile_rows,
                   parallel_chunks, compute_dtype):
    """Segmented, linear_out-projected branch reduction.

    Returns (P, num_mol_pad, 1) f32 per-slab partial sums (un-normalized:
    the 1/segment_size mean scale is applied by the caller)."""
    n, num_in = x.shape
    num_out = w.shape[1]

    # Cap the tile at the lane-rounded problem size; keep lane alignment.
    tile_rows = min(tile_rows, _round_up(max(n, 1), 128))
    assert tile_rows % 128 == 0

    tiles_needed = max(1, _cdiv(n, tile_rows))
    p_chunks = max(1, parallel_chunks)
    t_per_chunk = max(1, _cdiv(tiles_needed, p_chunks))
    tiles_total = p_chunks * t_per_chunk
    last_block = tiles_needed - 1
    T = t_per_chunk

    # O(N) metadata only: per-row molecule id, -1 sentinel on padded rows,
    # laid out lane-dense so each grid step sees a (1, TILE_R) vector.
    sizes_np = np.asarray(sizes, dtype=np.int64)
    seg = np.full((tiles_total * tile_rows,), -1, dtype=np.int32)
    seg[:n] = np.repeat(np.arange(len(sizes_np), dtype=np.int32), sizes_np)
    seg = jnp.asarray(seg.reshape(tiles_total, 1, tile_rows))

    w_t = jnp.asarray(w).T.astype(compute_dtype)                 # (num_out, num_in)
    b_col = jnp.asarray(b, jnp.float32).reshape(num_out, 1)
    wout_col = jnp.asarray(wout_row, jnp.float32).reshape(num_out, 1)

    x_itemsize = jnp.dtype(x.dtype).itemsize
    cost = pl.CostEstimate(
        flops=2 * n * num_in * num_out + 8 * n * num_out + 3 * n * num_mol_pad,
        transcendentals=n * num_out,
        bytes_accessed=(n * num_in * x_itemsize                  # fii/fij rows
                        + tiles_total * tile_rows * 4            # segment ids
                        + num_in * num_out * 4 + 8 * num_out     # weights
                        + 4 * p_chunks * num_mol_pad))           # accumulators

    return pl.pallas_call(
        _branch_kernel,
        out_shape=jax.ShapeDtypeStruct((p_chunks, num_mol_pad, 1), jnp.float32),
        grid=(p_chunks, T),
        in_specs=[
            # Streamed rows.  The block index is clamped so the DMA never
            # starts past the array; steps beyond the real data reuse the last
            # block and are neutralized by their -1 segment ids.
            pl.BlockSpec((tile_rows, num_in),
                         lambda p, t: (jnp.minimum(p * T + t, last_block), 0)),
            pl.BlockSpec((1, 1, tile_rows), lambda p, t: (p * T + t, 0, 0)),
            pl.BlockSpec((num_out, num_in), lambda p, t: (0, 0)),   # W^T resident
            pl.BlockSpec((num_out, 1), lambda p, t: (0, 0)),        # bias resident
            pl.BlockSpec((num_out, 1), lambda p, t: (0, 0)),        # wout resident
        ],
        out_specs=pl.BlockSpec((1, num_mol_pad, 1), lambda p, t: (p, 0, 0)),
        compiler_params=pltpu.CompilerParams(
            dimension_semantics=("parallel", "arbitrary"),
            vmem_limit_bytes=32 * 1024 * 1024),
        cost_estimate=cost,
    )(x, seg, w_t, b_col, wout_col)


# ------------------------------- forward pass -------------------------------

def energy_layer_forward(fii, fij, sizes, pair_sizes, params, *,
                         tile_rows=8192, parallel_chunks=1,
                         compute_dtype=jnp.float32):
    """Mirrors EnergyLayer.forward.  fii/fij are tuples whose first element has
    shape (1, N, 1, num_in, 1) (B=1, molecules concatenated along the row axis).

    parallel_chunks: 1 on v5e/v6e (single TensorCore), 2 on v7x (two cores)."""
    wd, bd, wo, bo, wout_d, wout_o, bout = params
    # (1, N, 1, num_in, 1) -> (N, num_in): size-1 squeezes only (no data copy).
    x_d = fii[0][0, :, 0, :, 0]
    x_o = fij[0][0, :, 0, :, 0]

    num_mol = len(sizes)
    num_mol_pad = _round_up(max(num_mol, 1), 128)    # lane-dense molecule axis

    acc_d = _energy_branch(x_d, sizes, wd, bd, wout_d,
                           num_mol_pad=num_mol_pad, tile_rows=tile_rows,
                           parallel_chunks=parallel_chunks,
                           compute_dtype=compute_dtype)
    acc_o = _energy_branch(x_o, pair_sizes, wo, bo, wout_o,
                           num_mol_pad=num_mol_pad, tile_rows=tile_rows,
                           parallel_chunks=parallel_chunks,
                           compute_dtype=compute_dtype)

    # Finalize in O(num_mol): segment means, branch sum, output bias.
    inv_d = jnp.asarray([1.0 / max(s, 1) for s in sizes], jnp.float32)
    inv_o = jnp.asarray([1.0 / max(s, 1) for s in pair_sizes], jnp.float32)
    tot_d = jnp.sum(acc_d, axis=0)[:num_mol, 0]
    tot_o = jnp.sum(acc_o, axis=0)[:num_mol, 0]
    return (tot_d * inv_d + tot_o * inv_o)[:, None] + bout       # (num_mol, 1)


# ------------------------------- params / ref --------------------------------

def make_params(key, num_in, num_out, zero_init=False):
    """Deterministic parameter init mirroring EnergyLayer.reset_parameters()."""
    k1, k2, k3 = jax.random.split(key, 3)
    ortho = jax.nn.initializers.orthogonal()
    if zero_init:
        wd_pt = jnp.zeros((num_out, num_in), jnp.float32)
        wo_pt = jnp.zeros((num_out, num_in), jnp.float32)
        wout_pt = jnp.zeros((1, 2 * num_out), jnp.float32)
    else:
        wd_pt = ortho(k1, (num_out, num_in), jnp.float32)
        wo_pt = ortho(k2, (num_out, num_in), jnp.float32)
        wout_pt = ortho(k3, (1, 2 * num_out), jnp.float32)

    wd = wd_pt.T                                  # (num_in, num_out)
    wo = wo_pt.T
    bd = jnp.zeros((1, num_out), jnp.float32)
    bo = jnp.zeros((1, num_out), jnp.float32)
    wout_d = wout_pt[:, :num_out]                 # (1, num_out)
    wout_o = wout_pt[:, num_out:]                 # (1, num_out)
    bout = jnp.zeros((1, 1), jnp.float32)
    return (wd, bd, wo, bo, wout_d, wout_o, bout)


def energy_layer_reference(fii, fij, sizes, pair_sizes, params):
    """Pure-JAX reference following the PyTorch code line-by-line (f32)."""
    wd, bd, wo, bo, wout_d, wout_o, bout = params
    act = jax.nn.silu
    fii_ = act(jnp.einsum('bnkc,co->bnko', fii[0][..., 0], wd) + bd)[:, :, 0, :]
    fij_ = act(jnp.einsum('bnkc,co->bnko', fij[0][..., 0], wo) + bo)[:, :, 0, :]
    offs_d = np.cumsum([0] + list(sizes))
    offs_p = np.cumsum([0] + list(pair_sizes))
    diag = jnp.concatenate(
        [jnp.mean(fii_[:, offs_d[i]:offs_d[i + 1]], axis=1)
         for i in range(len(sizes))], axis=0)
    off = jnp.concatenate(
        [jnp.mean(fij_[:, offs_p[i]:offs_p[i + 1]], axis=1)
         for i in range(len(pair_sizes))], axis=0)
    return diag @ wout_d.T + off @ wout_o.T + bout


# ---------------------------------- main ------------------------------------

if __name__ == "__main__":
    # TODO(synk): the PyTorch module takes an arbitrary `activation` callable;
    # this kernel hard-codes SiLU (the phisnet default).
    num_in, num_out = 32, 16
    sizes = [12, 16, 20]                         # atoms per molecule
    pair_sizes = [n * (n - 1) for n in sizes]    # atom pairs per molecule
    n_atoms, n_pairs = sum(sizes), sum(pair_sizes)

    key = jax.random.PRNGKey(0)
    k_fii, k_fij, k_par = jax.random.split(key, 3)

    # fii / fij carry shape (1, N, 1, num_in, 1), matching the squeezes in forward.
    fii = (jax.random.normal(k_fii, (1, n_atoms, 1, num_in, 1), jnp.float32),)
    fij = (jax.random.normal(k_fij, (1, n_pairs, 1, num_in, 1), jnp.float32),)
    params = make_params(k_par, num_in, num_out, zero_init=False)

    ref = energy_layer_reference(fii, fij, sizes, pair_sizes, params)

    # f32 streaming path, single slab (v5e/v6e-style config): exact check
    # against the PyTorch-style reference.
    out_f32 = energy_layer_forward(fii, fij, sizes, pair_sizes, params,
                                   tile_rows=128, parallel_chunks=1,
                                   compute_dtype=jnp.float32)
    out_f32 = jax.block_until_ready(out_f32)
    np.testing.assert_allclose(np.asarray(out_f32), np.asarray(ref),
                               rtol=1e-5, atol=1e-5)

    # bf16 streaming path with two parallel slabs (v7x-style config).  The
    # inputs are produced directly in bf16 so the kernel streams half the HBM
    # bytes; no wrapper-side pad/cast copy is ever made.  Compare against the
    # reference fed bf16-quantized activations/weights (f32 accumulation).
    def q(a):
        return a.astype(jnp.bfloat16).astype(jnp.float32)

    wd, bd, wo, bo, wout_d, wout_o, bout = params
    params_q = (q(wd), bd, q(wo), bo, wout_d, wout_o, bout)
    ref_q = energy_layer_reference((q(fii[0]),), (q(fij[0]),),
                                   sizes, pair_sizes, params_q)

    fii_bf = (fii[0].astype(jnp.bfloat16),)
    fij_bf = (fij[0].astype(jnp.bfloat16),)
    out_bf16 = energy_layer_forward(fii_bf, fij_bf, sizes, pair_sizes, params,
                                    tile_rows=256, parallel_chunks=2,
                                    compute_dtype=jnp.bfloat16)
    out_bf16 = jax.block_until_ready(out_bf16)
    np.testing.assert_allclose(np.asarray(out_bf16), np.asarray(ref_q),
                               rtol=5e-3, atol=5e-3)

    print("KERNEL_OK")
</pallas_src>

<mosaic_0001>
module attributes {stable_mosaic.version = 11 : i64} {
  func.func @_branch_kernel(%arg0: i32, %arg1: i32, %arg2: memref<128x32xf32, #tpu.memory_space<vmem>>, %arg3: memref<1x1x128xi32, #tpu.memory_space<vmem>>, %arg4: memref<16x32xf32, #tpu.memory_space<vmem>>, %arg5: memref<16x1xf32, #tpu.memory_space<vmem>>, %arg6: memref<16x1xf32, #tpu.memory_space<vmem>>, %arg7: memref<1x128x1xf32, #tpu.memory_space<vmem>>) attributes {dimension_semantics = [#tpu.dimension_semantics<parallel>, #tpu.dimension_semantics<arbitrary>], iteration_bounds = array<i64: 1, 1>, scalar_prefetch = 0 : i64, scratch_operands = 0 : i64, tpu.core_type = #tpu.core_type<tc>, window_params = [{transform_indices = @transform_0, window_bounds = array<i64: 128, 32>}, {transform_indices = @transform_1, window_bounds = array<i64: 1, 1, 128>}, {pipeline_mode = #tpu.pipeline_mode<synchronous>, transform_indices = @transform_2, window_bounds = array<i64: 16, 32>}, {pipeline_mode = #tpu.pipeline_mode<synchronous>, transform_indices = @transform_3, window_bounds = array<i64: 16, 1>}, {pipeline_mode = #tpu.pipeline_mode<synchronous>, transform_indices = @transform_4, window_bounds = array<i64: 16, 1>}, {transform_indices = @transform_5, window_bounds = array<i64: 1, 128, 1>}]} {
    %c0_i32 = arith.constant 0 : i32
    %0 = arith.cmpi eq, %arg1, %c0_i32 : i32
    %1 = arith.extui %0 : i1 to i32
    %c0_i32_0 = arith.constant 0 : i32
    %2 = arith.cmpi ne, %1, %c0_i32_0 : i32
    scf.if %2 {
      %cst_21 = arith.constant 0.000000e+00 : f32
      %36 = vector.broadcast %cst_21 : f32 to vector<1x128x1xf32>
      %c0_22 = arith.constant 0 : index
      %c0_23 = arith.constant 0 : index
      %c0_24 = arith.constant 0 : index
      %37 = vector.load %arg7[%c0_22, %c0_23, %c0_24] : memref<1x128x1xf32, #tpu.memory_space<vmem>>, vector<1x128x1xf32>
      tpu.vector_store %arg7[%c0_22, %c0_23, %c0_24], %36 {strides = array<i32>} : memref<1x128x1xf32, #tpu.memory_space<vmem>>, vector<1x128x1xf32>,
    } else {
    }
    %c0 = arith.constant 0 : index
    %c0_1 = arith.constant 0 : index
    %3 = vector.load %arg2[%c0, %c0_1] : memref<128x32xf32, #tpu.memory_space<vmem>>, vector<128x32xf32>
    %c0_2 = arith.constant 0 : index
    %c0_3 = arith.constant 0 : index
    %4 = vector.load %arg4[%c0_2, %c0_3] : memref<16x32xf32, #tpu.memory_space<vmem>>, vector<16x32xf32>
    %cst = arith.constant dense<0.000000e+00> : vector<16x128xf32>
    %5 = tpu.matmul %4, %3, %cst {dimension_numbers = #tpu.dot_dimension_numbers<[1], [1], [0], [0], [0, 0, 1, 0], [], []>} : vector<16x32xf32>, vector<128x32xf32>, vector<16x128xf32> -> vector<16x128xf32>
    %c0_4 = arith.constant 0 : index
    %c0_5 = arith.constant 0 : index
    %6 = vector.load %arg5[%c0_4, %c0_5] : memref<16x1xf32, #tpu.memory_space<vmem>>, vector<16x1xf32>
    %7 = vector.broadcast %6 : vector<16x1xf32> to vector<16x128xf32>
    %8 = arith.addf %5, %7 : vector<16x128xf32>
    %9 = arith.negf %8 : vector<16x128xf32>
    %10 = math.exp %9 : vector<16x128xf32>
    %cst_6 = arith.constant 1.000000e+00 : f32
    %11 = vector.broadcast %cst_6 : f32 to vector<16x128xf32>
    %12 = arith.addf %11, %10 : vector<16x128xf32>
    %13 = arith.divf %11, %12 : vector<16x128xf32>
    %14 = arith.mulf %8, %13 : vector<16x128xf32>
    %c0_7 = arith.constant 0 : index
    %c0_8 = arith.constant 0 : index
    %15 = vector.load %arg6[%c0_7, %c0_8] : memref<16x1xf32, #tpu.memory_space<vmem>>, vector<16x1xf32>
    %16 = vector.broadcast %15 : vector<16x1xf32> to vector<16x128xf32>
    %17 = arith.mulf %14, %16 : vector<16x128xf32>
    %cst_9 = arith.constant dense<0.000000e+00> : vector<128xf32>
    %18 = vector.multi_reduction <add>, %17, %cst_9 [0] : vector<16x128xf32> to vector<128xf32>
    %19 = vector.shape_cast %18 : vector<128xf32> to vector<1x128xf32>
    %c0_10 = arith.constant 0 : index
    %c0_11 = arith.constant 0 : index
    %c0_12 = arith.constant 0 : index
    %20 = vector.load %arg3[%c0_10, %c0_11, %c0_12] : memref<1x1x128xi32, #tpu.memory_space<vmem>>, vector<1x1x128xi32>
    %21 = vector.shape_cast %20 : vector<1x1x128xi32> to vector<1x128xi32>
    %22 = tpu.iota {dimensions = array<i32: 0>} : vector<128x1xi32>
    %23 = vector.broadcast %21 : vector<1x128xi32> to vector<128x128xi32>
    %24 = vector.broadcast %22 : vector<128x1xi32> to vector<128x128xi32>
    %25 = arith.cmpi eq, %23, %24 : vector<128x128xi32>
    %cst_13 = arith.constant 0.000000e+00 : f32
    %26 = vector.shape_cast %19 : vector<1x128xf32> to vector<1x128xf32>
    %27 = vector.broadcast %26 : vector<1x128xf32> to vector<128x128xf32>
    %28 = vector.broadcast %cst_13 : f32 to vector<128x128xf32>
    %29 = arith.select %25, %27, %28 : vector<128x128xi1>, vector<128x128xf32>
    %c0_14 = arith.constant 0 : index
    %c0_15 = arith.constant 0 : index
    %c0_16 = arith.constant 0 : index
    %30 = vector.load %arg7[%c0_14, %c0_15, %c0_16] : memref<1x128x1xf32, #tpu.memory_space<vmem>>, vector<1x128x1xf32>
    %cst_17 = arith.constant dense<0.000000e+00> : vector<128xf32>
    %31 = vector.multi_reduction <add>, %29, %cst_17 [1] : vector<128x128xf32> to vector<128xf32>
    %32 = vector.shape_cast %31 : vector<128xf32> to vector<128x1xf32>
    %33 = vector.shape_cast %32 : vector<128x1xf32> to vector<1x128x1xf32>
    %34 = arith.addf %30, %33 : vector<1x128x1xf32>
    %c0_18 = arith.constant 0 : index
    %c0_19 = arith.constant 0 : index
    %c0_20 = arith.constant 0 : index
    %35 = vector.load %arg7[%c0_18, %c0_19, %c0_20] : memref<1x128x1xf32, #tpu.memory_space<vmem>>, vector<1x128x1xf32>
    tpu.vector_store %arg7[%c0_18, %c0_19, %c0_20], %34 {strides = array<i32>} : memref<1x128x1xf32, #tpu.memory_space<vmem>>, vector<1x128x1xf32>,
    return
  }
  func.func @transform_0(%arg0: i32, %arg1: i32) -> (i32, i32) {
    %c1_i32 = arith.constant 1 : i32
    %0 = arith.muli %arg0, %c1_i32 : i32
    %1 = arith.addi %0, %arg1 : i32
    %c0_i32 = arith.constant 0 : i32
    %2 = arith.minsi %1, %c0_i32 : i32
    %c0_i32_0 = arith.constant 0 : i32
    %c0_i32_1 = arith.constant 0 : i32
    return %2, %c0_i32_0 : i32, i32
  }
  func.func @transform_1(%arg0: i32, %arg1: i32) -> (i32, i32, i32) {
    %c1_i32 = arith.constant 1 : i32
    %0 = arith.muli %arg0, %c1_i32 : i32
    %1 = arith.addi %0, %arg1 : i32
    %c0_i32 = arith.constant 0 : i32
    %c0_i32_0 = arith.constant 0 : i32
    %c0_i32_1 = arith.constant 0 : i32
    return %1, %c0_i32, %c0_i32_0 : i32, i32, i32
  }
  func.func @transform_2(%arg0: i32, %arg1: i32) -> (i32, i32) {
    %c0_i32 = arith.constant 0 : i32
    %c0_i32_0 = arith.constant 0 : i32
    %c0_i32_1 = arith.constant 0 : i32
    return %c0_i32, %c0_i32_0 : i32, i32
  }
  func.func @transform_3(%arg0: i32, %arg1: i32) -> (i32, i32) {
    %c0_i32 = arith.constant 0 : i32
    %c0_i32_0 = arith.constant 0 : i32
    %c0_i32_1 = arith.constant 0 : i32
    return %c0_i32, %c0_i32_0 : i32, i32
  }
  func.func @transform_4(%arg0: i32, %arg1: i32) -> (i32, i32) {
    %c0_i32 = arith.constant 0 : i32
    %c0_i32_0 = arith.constant 0 : i32
    %c0_i32_1 = arith.constant 0 : i32
    return %c0_i32, %c0_i32_0 : i32, i32
  }
  func.func @transform_5(%arg0: i32, %arg1: i32) -> (i32, i32, i32) {
    %c0_i32 = arith.constant 0 : i32
    %c0_i32_0 = arith.constant 0 : i32
    %c0_i32_1 = arith.constant 0 : i32
    return %arg0, %c0_i32, %c0_i32_0 : i32, i32, i32
  }
}

</mosaic_0001>

<llo_original>
// kernel: tpu_custom_call.1
$region0: #{tpu_custom_call.1}
  #allocation0 [shape = 'u32[]', space=smem, size = 0x4, offset = 0x4, fixed_abs, tag = 'smem constant byte address 0x4 - core index']
  #allocation1 [shape = 'u32[144,128]{1,0:T(1,128)}', space=vmem, size = 0x12000, scoped, tag = 'internal scratch']
  %s0 = inlined_call_operand.vmem [shape: f32[48,32], index: 0, kind: input, shape index: {}]
  %s1 = inlined_call_operand.vmem [shape: s32[1,1,128], index: 1, kind: input, shape index: {}]
  %s2 = inlined_call_operand.vmem [shape: f32[16,32], index: 2, kind: input, shape index: {}]
  %s3 = inlined_call_operand.vmem [shape: f32[16,1], index: 3, kind: input, shape index: {}]
  %s4 = inlined_call_operand.vmem [shape: f32[16,1], index: 4, kind: input, shape index: {}]
  %s5 = inlined_call_operand.vmem [shape: f32[1,128,1], index: 5, kind: output, shape index: {}]
  %s6 = sld [smem:[#allocation0]]
  $region34: #{tpu_custom_call.1} parent=0
    _
  %s8 = ssub.s32 1, %s6
  %s9 = scalar_select 0, %s8, %s6
  // Predicated region
  $region2: #{tpu_custom_call.1} parent=0 // pred_check
    _
  $region3: #{tpu_custom_call.1} parent=0 // pred_check_branch
    %11 = sbr.rel (0) target = $region5
  $region4: #{tpu_custom_call.1} parent=0 // pred_region
    %s12 = sadd.s32 0, 0
    %p13 = scmp.lt.s32.totalorder %s12, 0
    %s14 = scalar_select %p13, %s12, 0
    %s15 = smul.u32 16, %s14
    %s16 = ssub.s32 6, %s15
    %s17 = smul.u32 128, %s16
    %p18 = scmp.lt.s32.totalorder %s15, 5
    %s19 = scalar_select %p18, %s15, 5
    %s20 = smul.addr %s19, 8
    %s21 = scalar_lea.vmem %s0, %s20
    %s22 = sadd.s32 0, 0
    %p23 = scmp.lt.s32.totalorder %s22, 0
    %s24 = scalar_select %p23, %s22, 0
    %s25 = smul.u32 16, %s24
    %s26 = ssub.s32 6, %s25
    %s27 = smul.u32 128, %s26
  $region5: #{tpu_custom_call.1} parent=0 // pred_fallthru
    _
  // Predicated region
  $region6: #{tpu_custom_call.1} parent=0 // pred_check
    _
  $region7: #{tpu_custom_call.1} parent=0 // pred_check_branch
    %29 = sbr.rel (0) target = $region9
  $region8: #{tpu_custom_call.1} parent=0 // pred_region
    %s30 = sadd.s32 0, 0
    %p31 = scmp.lt.s32.totalorder %s30, 0
    %s32 = scalar_select %p31, %s30, 0
    %s33 = scalar_lea.vmem %s1, %s32
    %s34 = sadd.s32 0, 0
  $region9: #{tpu_custom_call.1} parent=0 // pred_fallthru
    _
  // Predicated region
  $region10: #{tpu_custom_call.1} parent=0 // pred_check
    _
  $region11: #{tpu_custom_call.1} parent=0 // pred_check_branch
    %36 = sbr.rel (0) target = $region13
  $region12: #{tpu_custom_call.1} parent=0 // pred_region
    _
  $region13: #{tpu_custom_call.1} parent=0 // pred_fallthru
    _
  // Predicated region
  $region14: #{tpu_custom_call.1} parent=0 // pred_check
    _
  $region15: #{tpu_custom_call.1} parent=0 // pred_check_branch
    %38 = sbr.rel (0) target = $region17
  $region16: #{tpu_custom_call.1} parent=0 // pred_region
    _
  $region17: #{tpu_custom_call.1} parent=0 // pred_fallthru
    _
  // Predicated region
  $region18: #{tpu_custom_call.1} parent=0 // pred_check
    _
  $region19: #{tpu_custom_call.1} parent=0 // pred_check_branch
    %40 = sbr.rel (0) target = $region21
  $region20: #{tpu_custom_call.1} parent=0 // pred_region
    _
  $region21: #{tpu_custom_call.1} parent=0 // pred_fallthru
    _
  %s41 = sadd.s32 0, 0
  %p42 = scmp.lt.s32.totalorder %s41, 0
  %s43 = scalar_select %p42, %s41, 0
  %s44 = smul.u32 16, %s43
  %s45 = ssub.s32 6, %s44
  %s46 = smul.u32 128, %s45
  %p47 = scmp.lt.s32.totalorder %s44, 5
  %s48 = scalar_select %p47, %s44, 5
  %s49 = smul.addr %s48, 8
  %s50 = scalar_lea.vmem %s0, %s49
  %s51 = sadd.s32 0, 0
  %p52 = scmp.lt.s32.totalorder %s51, 0
  %s53 = scalar_select %p52, %s51, 0
  %s54 = scalar_lea.vmem %s1, %s53
  %s55 = sadd.s32 0, 0
  %p56 = scmp.lt.s32.totalorder %s55, 0
  %s57 = scalar_select %p56, %s55, 0
  %s58 = smul.u32 16, %s57
  %s59 = ssub.s32 6, %s58
  %s60 = smul.u32 128, %s59
  %p61 = scmp.lt.s32.totalorder %s58, 5
  %s62 = scalar_select %p61, %s58, 5
  %s63 = smul.addr %s62, 8
  %s64 = scalar_lea.vmem %s0, %s63
  %s65 = sadd.s32 0, 0
  %p66 = scmp.lt.s32.totalorder %s65, 0
  %s67 = scalar_select %p66, %s65, 0
  %s68 = smul.u32 16, %s67
  %s69 = ssub.s32 6, %s68
  %s70 = smul.u32 128, %s69
  %s71 = sadd.s32 0, 0
  %p72 = scmp.lt.s32.totalorder %s71, 0
  %s73 = scalar_select %p72, %s71, 0
  %s74 = scalar_lea.vmem %s1, %s73
  %s75 = sadd.s32 0, 0
  %p76 = scmp.eq.s32.totalorder 0, 0
  // Predicated region
  $region22: #{tpu_custom_call.1} parent=0 // pred_check
    %p77 = pneg %p76
  $region23: #{tpu_custom_call.1} parent=0 // pred_check_branch
    %79 = sbr.rel (%p77) target = $region25
  $region24: #{tpu_custom_call.1} parent=0 // pred_region
    %vm80 = vcmask 7168
    %81 = vst.msk [vmem:[%s5] sm:$0xff] %vm80, 0.0
    %82 = vst.msk [vmem:[%s5 + $0x8] sm:$0xff] %vm80, 0.0
    %83 = vst.msk [vmem:[%s5 + $0x10] sm:$0xff] %vm80, 0.0
    %84 = vst.msk [vmem:[%s5 + $0x18] sm:$0xff] %vm80, 0.0
    %85 = vst.msk [vmem:[%s5 + $0x20] sm:$0xff] %vm80, 0.0
    %86 = vst.msk [vmem:[%s5 + $0x28] sm:$0xff] %vm80, 0.0
    %87 = vst.msk [vmem:[%s5 + $0x30] sm:$0xff] %vm80, 0.0
    %88 = vst.msk [vmem:[%s5 + $0x38] sm:$0xff] %vm80, 0.0
    %89 = vst.msk [vmem:[%s5 + $0x40] sm:$0xff] %vm80, 0.0
    %90 = vst.msk [vmem:[%s5 + $0x48] sm:$0xff] %vm80, 0.0
    %91 = vst.msk [vmem:[%s5 + $0x50] sm:$0xff] %vm80, 0.0
    %92 = vst.msk [vmem:[%s5 + $0x58] sm:$0xff] %vm80, 0.0
    %93 = vst.msk [vmem:[%s5 + $0x60] sm:$0xff] %vm80, 0.0
    %94 = vst.msk [vmem:[%s5 + $0x68] sm:$0xff] %vm80, 0.0
    %95 = vst.msk [vmem:[%s5 + $0x70] sm:$0xff] %vm80, 0.0
    %96 = vst.msk [vmem:[%s5 + $0x78] sm:$0xff] %vm80, 0.0
  $region25: #{tpu_custom_call.1} parent=0 // pred_fallthru
    _
  %v97 = vld [vmem:[%s64] sm:$0xff]
  %v98 = vld [vmem:[%s64 + $0x8] sm:$0xff]
  %v99 = vld [vmem:[%s64 + $0x10] sm:$0xff]
  %v100 = vld [vmem:[%s64 + $0x18] sm:$0xff]
  %v101 = vld [vmem:[%s64 + $0x20] sm:$0xff]
  %v102 = vld [vmem:[%s64 + $0x28] sm:$0xff]
  %v103 = vld [vmem:[%s64 + $0x30] sm:$0xff]
  %v104 = vld [vmem:[%s64 + $0x38] sm:$0xff]
  %v105 = vld [vmem:[%s64 + $0x40] sm:$0xff]
  %v106 = vld [vmem:[%s64 + $0x48] sm:$0xff]
  %v107 = vld [vmem:[%s64 + $0x50] sm:$0xff]
  %v108 = vld [vmem:[%s64 + $0x58] sm:$0xff]
  %v109 = vld [vmem:[%s64 + $0x60] sm:$0xff]
  %v110 = vld [vmem:[%s64 + $0x68] sm:$0xff]
  %v111 = vld [vmem:[%s64 + $0x70] sm:$0xff]
  %v112 = vld [vmem:[%s64 + $0x78] sm:$0xff]
  %v113 = vld [vmem:[%s2] sm:$0xff]
  %v114 = vld [vmem:[%s2 + $0x8] sm:$0xff]
  %v115 = vld [vmem:[%s3] sm:$0xff]
  %v116 = vld [vmem:[%s3 + $0x8] sm:$0xff]
  %118 = vset.pattern.permute.xlu0 0
  %119 = vperm.xlu0 %118, %v115
  %v120 = vpop.permute.xlu0 %119
  %123 = vset.pattern.permute.xlu0 0
  %124 = vperm.xlu0 %123, %v116
  %v125 = vpop.permute.xlu0 %124
  %vm127 = vcmask 261120
  %v129 = vsel %vm127, %v113, 0
  %v132 = vsel %vm127, %v114, 0
  %v135 = vsel %vm127, %v97, 0
  %v138 = vsel %vm127, %v98, 0
  %v141 = vsel %vm127, %v99, 0
  %v144 = vsel %vm127, %v100, 0
  %v147 = vsel %vm127, %v101, 0
  %v150 = vsel %vm127, %v102, 0
  %v153 = vsel %vm127, %v103, 0
  %v156 = vsel %vm127, %v104, 0
  %v159 = vsel %vm127, %v105, 0
  %v162 = vsel %vm127, %v106, 0
  %v165 = vsel %vm127, %v107, 0
  %v168 = vsel %vm127, %v108, 0
  %v171 = vsel %vm127, %v109, 0
  %v174 = vsel %vm127, %v110, 0
  %v177 = vsel %vm127, %v111, 0
  %v180 = vsel %vm127, %v112, 0
  %182 = vmatprep.subr.mxu0 0.0
  %183 = vmatpush1.xpose.msra.mxu0 %v180
  %184 = vmatprep.subr.mxu0 0.0
  %185 = vmatpush1.xpose.msra.mxu0 %v177
  %186 = vmatprep.subr.mxu0 0.0
  %187 = vmatpush1.xpose.msra.mxu0 %v174
  %188 = vmatprep.subr.mxu0 0.0
  %189 = vmatpush1.xpose.msra.mxu0 %v171
  %190 = vmatprep.subr.mxu0 0.0
  %191 = vmatpush1.xpose.msra.mxu0 %v168
  %192 = vmatprep.subr.mxu0 0.0
  %193 = vmatpush1.xpose.msra.mxu0 %v165
  %194 = vmatprep.subr.mxu0 0.0
  %195 = vmatpush1.xpose.msra.mxu0 %v162
  %196 = vmatprep.subr.mxu0 0.0
  %197 = vmatpush1.xpose.msra.mxu0 %v159
  %198 = vmatprep.subr.mxu0 0.0
  %199 = vmatpush1.xpose.msra.mxu0 %v156
  %200 = vmatprep.subr.mxu0 0.0
  %201 = vmatpush1.xpose.msra.mxu0 %v153
  %202 = vmatprep.subr.mxu0 0.0
  %203 = vmatpush1.xpose.msra.mxu0 %v150
  %204 = vmatprep.subr.mxu0 0.0
  %205 = vmatpush1.xpose.msra.mxu0 %v147
  %206 = vmatprep.subr.mxu0 0.0
  %207 = vmatpush1.xpose.msra.mxu0 %v144
  %208 = vmatprep.subr.mxu0 0.0
  %209 = vmatpush1.xpose.msra.mxu0 %v141
  %210 = vmatprep.subr.mxu0 0.0
  %211 = vmatpush1.xpose.msra.mxu0 %v138
  %212 = vmatprep.subr.mxu0 0.0
  %213 = vmatpush1.xpose.msra.mxu0 %v135
  %214 = vmatprep.subr.mxu0 0.0
  %215 = vmatpush2.xpose.msra.mxu0 0.0
  %216 = vmatprep.subr.mxu0 0.0
  %217 = vmatpush2.xpose.msra.mxu0 0.0
  %218 = vmatprep.subr.mxu0 0.0
  %219 = vmatpush2.xpose.msra.mxu0 0.0
  %220 = vmatprep.subr.mxu0 0.0
  %221 = vmatpush2.xpose.msra.mxu0 0.0
  %222 = vmatprep.subr.mxu0 0.0
  %223 = vmatpush2.xpose.msra.mxu0 0.0
  %224 = vmatprep.subr.mxu0 0.0
  %225 = vmatpush2.xpose.msra.mxu0 0.0
  %226 = vmatprep.subr.mxu0 0.0
  %227 = vmatpush2.xpose.msra.mxu0 0.0
  %228 = vmatprep.subr.mxu0 0.0
  %229 = vmatpush2.xpose.msra.mxu0 0.0
  %230 = vmatprep.subr.mxu0 0.0
  %231 = vmatpush2.xpose.msra.mxu0 0.0
  %232 = vmatprep.subr.mxu0 0.0
  %233 = vmatpush2.xpose.msra.mxu0 0.0
  %234 = vmatprep.subr.mxu0 0.0
  %235 = vmatpush2.xpose.msra.mxu0 0.0
  %236 = vmatprep.subr.mxu0 0.0
  %237 = vmatpush2.xpose.msra.mxu0 0.0
  %238 = vmatprep.subr.mxu0 0.0
  %239 = vmatpush2.xpose.msra.mxu0 0.0
  %240 = vmatprep.subr.mxu0 0.0
  %241 = vmatpush2.xpose.msra.mxu0 0.0
  %242 = vmatprep.subr.mxu0 0.0
  %243 = vmatpush2.xpose.msra.mxu0 0.0
  %244 = vmatprep.subr.mxu0 0.0
  %245 = vmatpush2.xpose.msra.mxu0 0.0
  %246 = vmatprep.mubr.f32.mxu0 0.0
  %247 = vmatmul.mubr.f32.gmra.mxu0 %v129
  %v248 = vpop.f32.mrf.mxu0
  %v249 = vadd.f32 %v120, %v248
  %v250 = vpop.f32.mrf.mxu0
  %251 = vmatprep.mubr.f32.mxu0 0.0
  %252 = vmatmul.mubr.f32.gmra.mxu0 %v132
  %v253 = vpop.f32.mrf.mxu0
  %v254 = vadd.f32 %v125, %v253
  %v255 = vpop.f32.mrf.mxu0
  %256 = vdwg.mxu0
  %v257 = vxor.u32 %v249, 2147483648
  %v258 = vxor.u32 %v254, 2147483648
  %v259 = vmul.f32 %v257, 1.442695
  %v260 = vpow.pop %v259
  %v261 = vmul.f32 %v258, 1.442695
  %v262 = vpow.pop %v261
  %v263 = vadd.f32 %v260, 1.0
  %v264 = vadd.f32 %v262, 1.0
  %v265 = vrcp.pop %v263
  %v266 = vmul.f32 1.0, %v265
  %v267 = vrcp.pop %v264
  %v268 = vmul.f32 1.0, %v267
  %v269 = vmul.f32 %v249, %v266
  %v270 = vmul.f32 %v254, %v268
  %v271 = vld [vmem:[%s4] sm:$0xff]
  %v272 = vld [vmem:[%s4 + $0x8] sm:$0xff]
  %274 = vset.pattern.permute.xlu0 0
  %275 = vperm.xlu0 %274, %v271
  %v276 = vpop.permute.xlu0 %275
  %279 = vset.pattern.permute.xlu0 0
  %280 = vperm.xlu0 %279, %v272
  %v281 = vpop.permute.xlu0 %280
  %v283 = vmul.f32 %v269, %v276
  %v284 = vmul.f32 %v270, %v281
  %v285 = vadd.f32 %v283, %v284
  %v286 = vrot.slane %v285, 4
  %v287 = vadd.f32 %v285, %v286
  %v288 = vrot.slane %v287, 2
  %v289 = vadd.f32 %v287, %v288
  %v290 = vrot.slane %v289, 1
  %v291 = vadd.f32 %v289, %v290
  %v292 = vld [vmem:[%s74] sm:$0x1]
  %v293 = vlaneseq
  %v294 = vshrl.u32 %v293, 7
  %v295 = vadd.s32 %v294, 8
  %v296 = vadd.s32 %v294, 16
  %v297 = vadd.s32 %v294, 24
  %v298 = vadd.s32 %v294, 32
  %v299 = vadd.s32 %v294, 40
  %v300 = vadd.s32 %v294, 48
  %v301 = vadd.s32 %v294, 56
  %v302 = vadd.s32 %v294, 64
  %v303 = vadd.s32 %v294, 72
  %v304 = vadd.s32 %v294, 80
  %v305 = vadd.s32 %v294, 88
  %v306 = vadd.s32 %v294, 96
  %v307 = vadd.s32 %v294, 104
  %v308 = vadd.s32 %v294, 112
  %v309 = vadd.s32 %v294, 120
  %v310 = vlaneseq
  %v311 = vshrl.u32 %v310, 7
  %v312 = vsub.s32 0, %v311
  %v313 = vrot.slane %v292, %v312
  %vm314 = vcmp.eq.s32.totalorder %v313, %v294
  %vm315 = vcmp.eq.s32.totalorder %v313, %v295
  %vm316 = vcmp.eq.s32.totalorder %v313, %v296
  %vm317 = vcmp.eq.s32.totalorder %v313, %v297
  %vm318 = vcmp.eq.s32.totalorder %v313, %v298
  %vm319 = vcmp.eq.s32.totalorder %v313, %v299
  %vm320 = vcmp.eq.s32.totalorder %v313, %v300
  %vm321 = vcmp.eq.s32.totalorder %v313, %v301
  %vm322 = vcmp.eq.s32.totalorder %v313, %v302
  %vm323 = vcmp.eq.s32.totalorder %v313, %v303
  %vm324 = vcmp.eq.s32.totalorder %v313, %v304
  %vm325 = vcmp.eq.s32.totalorder %v313, %v305
  %vm326 = vcmp.eq.s32.totalorder %v313, %v306
  %vm327 = vcmp.eq.s32.totalorder %v313, %v307
  %vm328 = vcmp.eq.s32.totalorder %v313, %v308
  %vm329 = vcmp.eq.s32.totalorder %v313, %v309
  %v330 = vsel %vm314, %v291, 0.0
  %v331 = vsel %vm315, %v291, 0.0
  %v332 = vsel %vm316, %v291, 0.0
  %v333 = vsel %vm317, %v291, 0.0
  %v334 = vsel %vm318, %v291, 0.0
  %v335 = vsel %vm319, %v291, 0.0
  %v336 = vsel %vm320, %v291, 0.0
  %v337 = vsel %vm321, %v291, 0.0
  %v338 = vsel %vm322, %v291, 0.0
  %v339 = vsel %vm323, %v291, 0.0
  %v340 = vsel %vm324, %v291, 0.0
  %v341 = vsel %vm325, %v291, 0.0
  %v342 = vsel %vm326, %v291, 0.0
  %v343 = vsel %vm327, %v291, 0.0
  %v344 = vsel %vm328, %v291, 0.0
  %v345 = vsel %vm329, %v291, 0.0
  %v346 = vld [vmem:[%s5] sm:$0xff]
  %v347 = vld [vmem:[%s5 + $0x8] sm:$0xff]
  %v348 = vld [vmem:[%s5 + $0x10] sm:$0xff]
  %v349 = vld [vmem:[%s5 + $0x18] sm:$0xff]
  %v350 = vld [vmem:[%s5 + $0x20] sm:$0xff]
  %v351 = vld [vmem:[%s5 + $0x28] sm:$0xff]
  %v352 = vld [vmem:[%s5 + $0x30] sm:$0xff]
  %v353 = vld [vmem:[%s5 + $0x38] sm:$0xff]
  %v354 = vld [vmem:[%s5 + $0x40] sm:$0xff]
  %v355 = vld [vmem:[%s5 + $0x48] sm:$0xff]
  %v356 = vld [vmem:[%s5 + $0x50] sm:$0xff]
  %v357 = vld [vmem:[%s5 + $0x58] sm:$0xff]
  %v358 = vld [vmem:[%s5 + $0x60] sm:$0xff]
  %v359 = vld [vmem:[%s5 + $0x68] sm:$0xff]
  %v360 = vld [vmem:[%s5 + $0x70] sm:$0xff]
  %v361 = vld [vmem:[%s5 + $0x78] sm:$0xff]
  %362 = vadd.xlane.f32.xlu0 %v330
  %v363 = vpop.xlane.xlu0 %362
  %364 = vadd.xlane.f32.xlu0 %v331
  %v365 = vpop.xlane.xlu0 %364
  %366 = vadd.xlane.f32.xlu0 %v332
  %v367 = vpop.xlane.xlu0 %366
  %368 = vadd.xlane.f32.xlu0 %v333
  %v369 = vpop.xlane.xlu0 %368
  %370 = vadd.xlane.f32.xlu0 %v334
  %v371 = vpop.xlane.xlu0 %370
  %372 = vadd.xlane.f32.xlu0 %v335
  %v373 = vpop.xlane.xlu0 %372
  %374 = vadd.xlane.f32.xlu0 %v336
  %v375 = vpop.xlane.xlu0 %374
  %376 = vadd.xlane.f32.xlu0 %v337
  %v377 = vpop.xlane.xlu0 %376
  %378 = vadd.xlane.f32.xlu0 %v338
  %v379 = vpop.xlane.xlu0 %378
  %380 = vadd.xlane.f32.xlu0 %v339
  %v381 = vpop.xlane.xlu0 %380
  %382 = vadd.xlane.f32.xlu0 %v340
  %v383 = vpop.xlane.xlu0 %382
  %384 = vadd.xlane.f32.xlu0 %v341
  %v385 = vpop.xlane.xlu0 %384
  %386 = vadd.xlane.f32.xlu0 %v342
  %v387 = vpop.xlane.xlu0 %386
  %388 = vadd.xlane.f32.xlu0 %v343
  %v389 = vpop.xlane.xlu0 %388
  %390 = vadd.xlane.f32.xlu0 %v344
  %v391 = vpop.xlane.xlu0 %390
  %392 = vadd.xlane.f32.xlu0 %v345
  %v393 = vpop.xlane.xlu0 %392
  %v394 = vadd.f32 %v346, %v363
  %v395 = vadd.f32 %v347, %v365
  %v396 = vadd.f32 %v348, %v367
  %v397 = vadd.f32 %v349, %v369
  %v398 = vadd.f32 %v350, %v371
  %v399 = vadd.f32 %v351, %v373
  %v400 = vadd.f32 %v352, %v375
  %v401 = vadd.f32 %v353, %v377
  %v402 = vadd.f32 %v354, %v379
  %v403 = vadd.f32 %v355, %v381
  %v404 = vadd.f32 %v356, %v383
  %v405 = vadd.f32 %v357, %v385
  %v406 = vadd.f32 %v358, %v387
  %v407 = vadd.f32 %v359, %v389
  %v408 = vadd.f32 %v360, %v391
  %v409 = vadd.f32 %v361, %v393
  %vm410 = vcmask 7168
  %411 = vst.msk [vmem:[%s5] sm:$0xff] %vm410, %v394
  %412 = vst.msk [vmem:[%s5 + $0x8] sm:$0xff] %vm410, %v395
  %413 = vst.msk [vmem:[%s5 + $0x10] sm:$0xff] %vm410, %v396
  %414 = vst.msk [vmem:[%s5 + $0x18] sm:$0xff] %vm410, %v397
  %415 = vst.msk [vmem:[%s5 + $0x20] sm:$0xff] %vm410, %v398
  %416 = vst.msk [vmem:[%s5 + $0x28] sm:$0xff] %vm410, %v399
  %417 = vst.msk [vmem:[%s5 + $0x30] sm:$0xff] %vm410, %v400
  %418 = vst.msk [vmem:[%s5 + $0x38] sm:$0xff] %vm410, %v401
  %419 = vst.msk [vmem:[%s5 + $0x40] sm:$0xff] %vm410, %v402
  %420 = vst.msk [vmem:[%s5 + $0x48] sm:$0xff] %vm410, %v403
  %421 = vst.msk [vmem:[%s5 + $0x50] sm:$0xff] %vm410, %v404
  %422 = vst.msk [vmem:[%s5 + $0x58] sm:$0xff] %vm410, %v405
  %423 = vst.msk [vmem:[%s5 + $0x60] sm:$0xff] %vm410, %v406
  %424 = vst.msk [vmem:[%s5 + $0x68] sm:$0xff] %vm410, %v407
  %425 = vst.msk [vmem:[%s5 + $0x70] sm:$0xff] %vm410, %v408
  %426 = vst.msk [vmem:[%s5 + $0x78] sm:$0xff] %vm410, %v409
  // Predicated region
  $region26: #{tpu_custom_call.1} parent=0 // pred_check
    _
  $region27: #{tpu_custom_call.1} parent=0 // pred_check_branch
    %428 = sbr.rel (0) target = $region29
  $region28: #{tpu_custom_call.1} parent=0 // pred_region
    _
  $region29: #{tpu_custom_call.1} parent=0 // pred_fallthru
    _
  // Predicated region
  $region30: #{tpu_custom_call.1} parent=0 // pred_check
    _
  $region31: #{tpu_custom_call.1} parent=0 // pred_check_branch
    %430 = sbr.rel (0) target = $region33
  $region32: #{tpu_custom_call.1} parent=0 // pred_region
    _
  $region33: #{tpu_custom_call.1} parent=0 // pred_fallthru
    _

</llo_original>
